<compile_context>
chip_gen: v7x
topology: tpu7x:2x2x1
jax: 0.10.0
libtpu: 0.0.40
codegen_flags: <defaults>
</compile_context>

<pallas_src>
import functools

import jax
import jax.numpy as jnp
from jax.experimental import pallas as pl
from jax.experimental.pallas import tpu as pltpu

LANE = 128


def decoder_kernel(z_ref, w1_ref, b1_ref, w2_ref, b2_ref, mu_ref):
    # Layer 1: (TB, L) @ (L, Hp) on the MXU, bf16 inputs, f32 accumulation.
    h = jnp.dot(z_ref[...], w1_ref[...], preferred_element_type=jnp.float32)
    # Bias add + ReLU in f32 (cheap VPU work; v5e has no bf16 VPU).
    h = jnp.maximum(h + b1_ref[...], 0.0)
    # Layer 2: (TB, Hp) @ (Hp, Op) -> mu, again bf16 MXU inputs / f32 accum.
    mu = jnp.dot(h.astype(w2_ref.dtype), w2_ref[...],
                 preferred_element_type=jnp.float32)
    # Lane-dense (multiple-of-128) f32 store, no scale written from the kernel.
    mu_ref[...] = (mu + b2_ref[...]).astype(mu_ref.dtype)


def _round_up(x, m):
    return ((x + m - 1) // m) * m


def _pick_batch_tile(batch, max_tile=512):
    """Largest tile <= max_tile that evenly divides batch (and is 8-aligned)."""
    if batch <= max_tile:
        return batch
    for tb in (512, 256, 128, 64, 32, 16, 8):
        if batch % tb == 0:
            return tb
    return batch  # fallback: single tile covering the whole (odd-sized) batch


@functools.partial(jax.jit, static_argnames=("block_b",))
def decoder_forward(z, w1, b1, w2, b2, *, block_b=None):
    """Returns (mu, scale) — the parameters of Normal(mu, 1)."""
    B, L = z.shape
    H = w1.shape[1]
    O = w2.shape[1]
    Hp = _round_up(max(H, LANE), LANE)   # padded hidden width
    Op = _round_up(max(O, LANE), LANE)   # padded output width (lane-dense)

    # Zero-pad feature dims once (outside the kernel).  Padded hidden columns
    # have zero weight/bias -> ReLU(0)=0, and padded W2 rows multiply those
    # zeros, so the first O output columns are bit-identical to the unpadded
    # computation.
    w1p = jnp.zeros((L, Hp), jnp.float32).at[:, :H].set(w1)
    b1p = jnp.zeros((1, Hp), jnp.float32).at[:, :H].set(b1)
    w2p = jnp.zeros((Hp, Op), jnp.float32).at[:H, :O].set(w2)
    b2p = jnp.zeros((1, Op), jnp.float32).at[:, :O].set(b2)

    # bf16 MXU inputs; biases stay f32 (accumulation is f32 via
    # preferred_element_type inside the kernel).
    z_bf = z.astype(jnp.bfloat16)
    w1_bf = w1p.astype(jnp.bfloat16)
    w2_bf = w2p.astype(jnp.bfloat16)

    tb = block_b if block_b is not None else _pick_batch_tile(B)
    grid = (B // tb,)

    const = lambda shape: pl.BlockSpec(shape, lambda i: (0,) * len(shape))

    mu_padded = pl.pallas_call(
        decoder_kernel,
        out_shape=jax.ShapeDtypeStruct((B, Op), jnp.float32),
        grid=grid,
        in_specs=[
            pl.BlockSpec((tb, L), lambda i: (i, 0)),   # z tile (pipelined)
            const((L, Hp)),                            # W1 (VMEM-resident)
            const((1, Hp)),                            # b1
            const((Hp, Op)),                           # W2
            const((1, Op)),                            # b2
        ],
        out_specs=pl.BlockSpec((tb, Op), lambda i: (i, 0)),
        compiler_params=pltpu.CompilerParams(
            dimension_semantics=("parallel",)),        # v7x: shard over 2 TCs
    )(z_bf, w1_bf, b1p, w2_bf, b2p)

    mu = mu_padded[:, :O]
    # Normal(mu, ones_like(mu)): scale is a constant -> build it in XLA, not in
    # the kernel (saves the store slot + half the output DMA).
    scale = jnp.ones_like(mu)
    return mu, scale


def init_params(key, latent, hidden, out):
    """Deterministic PyTorch-Linear-style init: U(-1/sqrt(fan_in), 1/sqrt(fan_in))."""
    k1, k2, k3, k4 = jax.random.split(key, 4)
    s1 = 1.0 / jnp.sqrt(latent)
    s2 = 1.0 / jnp.sqrt(hidden)
    w1 = jax.random.uniform(k1, (latent, hidden), jnp.float32, -s1, s1)
    b1 = jax.random.uniform(k2, (1, hidden), jnp.float32, -s1, s1)
    w2 = jax.random.uniform(k3, (hidden, out), jnp.float32, -s2, s2)
    b2 = jax.random.uniform(k4, (1, out), jnp.float32, -s2, s2)
    return w1, b1, w2, b2


if __name__ == "__main__":
    key = jax.random.PRNGKey(0)
    k_z, k_p = jax.random.split(key)

    batch, latent, hidden, out = 8, 16, 32, 64
    z = jax.random.normal(k_z, (batch, latent), jnp.float32)
    w1, b1, w2, b2 = init_params(k_p, latent, hidden, out)

    mu, scale = decoder_forward(z, w1, b1, w2, b2)
    jax.block_until_ready(mu)
    jax.block_until_ready(scale)

    # Reference in plain JAX with the same bf16 quantization of the matmul
    # inputs (f32 accumulation), matching the kernel's numerics.
    f32 = jnp.float32
    z_q = z.astype(jnp.bfloat16).astype(f32)
    w1_q = w1.astype(jnp.bfloat16).astype(f32)
    w2_q = w2.astype(jnp.bfloat16).astype(f32)
    h_ref = jnp.maximum(z_q @ w1_q + b1, 0.0)
    h_ref = h_ref.astype(jnp.bfloat16).astype(f32)
    mu_ref = h_ref @ w2_q + b2
    assert mu.shape == (batch, out), "mu shape mismatch"
    assert jnp.allclose(mu, mu_ref, atol=1e-4, rtol=1e-4), "mu mismatch"
    assert jnp.all(scale == 1.0), "scale mismatch"

    print("KERNEL_OK")
</pallas_src>

<mosaic_0001>
module attributes {stable_mosaic.version = 11 : i64} {
  func.func @decoder_kernel(%arg0: i32, %arg1: memref<8x16xbf16, #tpu.memory_space<vmem>>, %arg2: memref<16x128xbf16, #tpu.memory_space<vmem>>, %arg3: memref<1x128xf32, #tpu.memory_space<vmem>>, %arg4: memref<128x128xbf16, #tpu.memory_space<vmem>>, %arg5: memref<1x128xf32, #tpu.memory_space<vmem>>, %arg6: memref<8x128xf32, #tpu.memory_space<vmem>>) attributes {dimension_semantics = [#tpu.dimension_semantics<parallel>], iteration_bounds = array<i64: 1>, scalar_prefetch = 0 : i64, scratch_operands = 0 : i64, tpu.core_type = #tpu.core_type<tc>, window_params = [{transform_indices = @transform_0, window_bounds = array<i64: 8, 16>}, {pipeline_mode = #tpu.pipeline_mode<synchronous>, transform_indices = @transform_1, window_bounds = array<i64: 16, 128>}, {pipeline_mode = #tpu.pipeline_mode<synchronous>, transform_indices = @transform_2, window_bounds = array<i64: 1, 128>}, {pipeline_mode = #tpu.pipeline_mode<synchronous>, transform_indices = @transform_3, window_bounds = array<i64: 128, 128>}, {pipeline_mode = #tpu.pipeline_mode<synchronous>, transform_indices = @transform_4, window_bounds = array<i64: 1, 128>}, {transform_indices = @transform_5, window_bounds = array<i64: 8, 128>}]} {
    %c0 = arith.constant 0 : index
    %c0_0 = arith.constant 0 : index
    %0 = vector.load %arg1[%c0, %c0_0] : memref<8x16xbf16, #tpu.memory_space<vmem>>, vector<8x16xbf16>
    %c0_1 = arith.constant 0 : index
    %c0_2 = arith.constant 0 : index
    %1 = vector.load %arg2[%c0_1, %c0_2] : memref<16x128xbf16, #tpu.memory_space<vmem>>, vector<16x128xbf16>
    %cst = arith.constant dense<0.000000e+00> : vector<8x128xf32>
    %2 = tpu.matmul %0, %1, %cst {dimension_numbers = #tpu.dot_dimension_numbers<[1], [0], [0], [1], [0, 0, 1, 1], [], []>} : vector<8x16xbf16>, vector<16x128xbf16>, vector<8x128xf32> -> vector<8x128xf32>
    %c0_3 = arith.constant 0 : index
    %c0_4 = arith.constant 0 : index
    %3 = vector.load %arg3[%c0_3, %c0_4] : memref<1x128xf32, #tpu.memory_space<vmem>>, vector<1x128xf32>
    %4 = vector.broadcast %3 : vector<1x128xf32> to vector<8x128xf32>
    %5 = arith.addf %2, %4 : vector<8x128xf32>
    %cst_5 = arith.constant 0.000000e+00 : f32
    %6 = vector.broadcast %cst_5 : f32 to vector<8x128xf32>
    %7 = arith.maximumf %5, %6 : vector<8x128xf32>
    %8 = arith.truncf %7 : vector<8x128xf32> to vector<8x128xbf16>
    %c0_6 = arith.constant 0 : index
    %c0_7 = arith.constant 0 : index
    %9 = vector.load %arg4[%c0_6, %c0_7] : memref<128x128xbf16, #tpu.memory_space<vmem>>, vector<128x128xbf16>
    %cst_8 = arith.constant dense<0.000000e+00> : vector<8x128xf32>
    %10 = tpu.matmul %8, %9, %cst_8 {dimension_numbers = #tpu.dot_dimension_numbers<[1], [0], [0], [1], [0, 0, 1, 1], [], []>} : vector<8x128xbf16>, vector<128x128xbf16>, vector<8x128xf32> -> vector<8x128xf32>
    %c0_9 = arith.constant 0 : index
    %c0_10 = arith.constant 0 : index
    %11 = vector.load %arg5[%c0_9, %c0_10] : memref<1x128xf32, #tpu.memory_space<vmem>>, vector<1x128xf32>
    %12 = vector.broadcast %11 : vector<1x128xf32> to vector<8x128xf32>
    %13 = arith.addf %10, %12 : vector<8x128xf32>
    %c0_11 = arith.constant 0 : index
    %c0_12 = arith.constant 0 : index
    %14 = vector.load %arg6[%c0_11, %c0_12] : memref<8x128xf32, #tpu.memory_space<vmem>>, vector<8x128xf32>
    tpu.vector_store %arg6[%c0_11, %c0_12], %13 {strides = array<i32>} : memref<8x128xf32, #tpu.memory_space<vmem>>, vector<8x128xf32>,
    return
  }
  func.func @transform_0(%arg0: i32) -> (i32, i32) {
    %c0_i32 = arith.constant 0 : i32
    %c0_i32_0 = arith.constant 0 : i32
    return %arg0, %c0_i32 : i32, i32
  }
  func.func @transform_1(%arg0: i32) -> (i32, i32) {
    %c0_i32 = arith.constant 0 : i32
    %c0_i32_0 = arith.constant 0 : i32
    %c0_i32_1 = arith.constant 0 : i32
    return %c0_i32, %c0_i32_0 : i32, i32
  }
  func.func @transform_2(%arg0: i32) -> (i32, i32) {
    %c0_i32 = arith.constant 0 : i32
    %c0_i32_0 = arith.constant 0 : i32
    %c0_i32_1 = arith.constant 0 : i32
    return %c0_i32, %c0_i32_0 : i32, i32
  }
  func.func @transform_3(%arg0: i32) -> (i32, i32) {
    %c0_i32 = arith.constant 0 : i32
    %c0_i32_0 = arith.constant 0 : i32
    %c0_i32_1 = arith.constant 0 : i32
    return %c0_i32, %c0_i32_0 : i32, i32
  }
  func.func @transform_4(%arg0: i32) -> (i32, i32) {
    %c0_i32 = arith.constant 0 : i32
    %c0_i32_0 = arith.constant 0 : i32
    %c0_i32_1 = arith.constant 0 : i32
    return %c0_i32, %c0_i32_0 : i32, i32
  }
  func.func @transform_5(%arg0: i32) -> (i32, i32) {
    %c0_i32 = arith.constant 0 : i32
    %c0_i32_0 = arith.constant 0 : i32
    return %arg0, %c0_i32 : i32, i32
  }
}

</mosaic_0001>

<llo_original>
// kernel: decoder_forward.1
$region0: #{decoder_forward.1}
  #allocation0 [shape = 'u32[]', space=smem, size = 0x4, offset = 0x4, fixed_abs, tag = 'smem constant byte address 0x4 - core index']
  #allocation1 [shape = 'u32[144,128]{1,0:T(1,128)}', space=vmem, size = 0x12000, scoped, tag = 'internal scratch']
  %s0 = inlined_call_operand.vmem [shape: bf16[8,16], index: 0, kind: input, shape index: {}]
  %s1 = inlined_call_operand.vmem [shape: bf16[16,128], index: 1, kind: input, shape index: {}]
  %s2 = inlined_call_operand.vmem [shape: f32[1,128], index: 2, kind: input, shape index: {}]
  %s3 = inlined_call_operand.vmem [shape: bf16[128,128], index: 3, kind: input, shape index: {}]
  %s4 = inlined_call_operand.vmem [shape: f32[1,128], index: 4, kind: input, shape index: {}]
  %s5 = inlined_call_operand.hbm [shape: f32[8,128], index: 5, kind: output, shape index: {}]
  %s6 = sld [smem:[#allocation0]]
  $region30: #{decoder_forward.1} parent=0
    _
  %s8 = ssub.s32 1, %s6
  %s9 = scalar_select 0, %s8, %s6
  $region1: #{decoder_forward.1} parent=0
    #allocation2 [shape = 'u8[4096]{0}', space=vmem, size = 0x1000, scoped, tag = 'output window, operand 0, single buffered']
    #allocation3 [shape = 's32[1]{0}', space=sflag, size = 0x4, scoped, tag = 'scoped memory for decoder_forward.1']
    %10 = vsyncpa [#allocation3], 0
    // Predicated region
    $region2: #{decoder_forward.1} parent=1 // pred_check
      _
    $region3: #{decoder_forward.1} parent=1 // pred_check_branch
      %12 = sbr.rel (0) target = $region5
    $region4: #{decoder_forward.1} parent=1 // pred_region
      _
    $region5: #{decoder_forward.1} parent=1 // pred_fallthru
      _
    // Predicated region
    $region6: #{decoder_forward.1} parent=1 // pred_check
      _
    $region7: #{decoder_forward.1} parent=1 // pred_check_branch
      %14 = sbr.rel (0) target = $region9
    $region8: #{decoder_forward.1} parent=1 // pred_region
      _
    $region9: #{decoder_forward.1} parent=1 // pred_fallthru
      _
    // Predicated region
    $region10: #{decoder_forward.1} parent=1 // pred_check
      _
    $region11: #{decoder_forward.1} parent=1 // pred_check_branch
      %16 = sbr.rel (0) target = $region13
    $region12: #{decoder_forward.1} parent=1 // pred_region
      _
    $region13: #{decoder_forward.1} parent=1 // pred_fallthru
      _
    // Predicated region
    $region14: #{decoder_forward.1} parent=1 // pred_check
      _
    $region15: #{decoder_forward.1} parent=1 // pred_check_branch
      %18 = sbr.rel (0) target = $region17
    $region16: #{decoder_forward.1} parent=1 // pred_region
      _
    $region17: #{decoder_forward.1} parent=1 // pred_fallthru
      _
    // Predicated region
    $region18: #{decoder_forward.1} parent=1 // pred_check
      _
    $region19: #{decoder_forward.1} parent=1 // pred_check_branch
      %20 = sbr.rel (0) target = $region21
    $region20: #{decoder_forward.1} parent=1 // pred_region
      _
    $region21: #{decoder_forward.1} parent=1 // pred_fallthru
      _
    %v22 = vld [vmem:[%s0] sm:$0xf]
    %v23 = vld [vmem:[%s1] sm:$0xf]
    %v24 = vld [vmem:[%s1 + $0x4] sm:$0xf]
    %v25 = vld [vmem:[%s2] sm:$0x1]
    %v27 = vlaneseq
    %v28 = vshrl.u32 %v27, 7
    %v29 = vsub.s32 0, %v28
    %v30 = vrot.slane %v25, %v29
    %v34 = vunpack.c.l.b16 %v23
    %v35 = vunpack.c.l.b16 %v24
    %v36 = vpack.c.b16 %v35, %v34
    %vm38 = vcmask 130048
    %v40 = vsel %vm38, %v22, 0
    %42 = vmatprep.subr.bf16.mxu0 0
    %43 = vmatpush1.bf16.msra.mxu0 %v36
    %44 = vmatprep.subr.bf16.mxu0 0
    %45 = vmatpush1.bf16.msra.mxu0 0
    %46 = vmatprep.subr.bf16.mxu0 0
    %47 = vmatpush1.bf16.msra.mxu0 0
    %48 = vmatprep.subr.bf16.mxu0 0
    %49 = vmatpush1.bf16.msra.mxu0 0
    %50 = vmatprep.subr.bf16.mxu0 0
    %51 = vmatpush1.bf16.msra.mxu0 0
    %52 = vmatprep.subr.bf16.mxu0 0
    %53 = vmatpush1.bf16.msra.mxu0 0
    %54 = vmatprep.subr.bf16.mxu0 0
    %55 = vmatpush1.bf16.msra.mxu0 0
    %56 = vmatprep.subr.bf16.mxu0 0
    %57 = vmatpush1.bf16.msra.mxu0 0
    %58 = vmatprep.subr.bf16.mxu0 0
    %59 = vmatpush1.bf16.msra.mxu0 0
    %60 = vmatprep.subr.bf16.mxu0 0
    %61 = vmatpush1.bf16.msra.mxu0 0
    %62 = vmatprep.subr.bf16.mxu0 0
    %63 = vmatpush1.bf16.msra.mxu0 0
    %64 = vmatprep.subr.bf16.mxu0 0
    %65 = vmatpush1.bf16.msra.mxu0 0
    %66 = vmatprep.subr.bf16.mxu0 0
    %67 = vmatpush1.bf16.msra.mxu0 0
    %68 = vmatprep.subr.bf16.mxu0 0
    %69 = vmatpush1.bf16.msra.mxu0 0
    %70 = vmatprep.subr.bf16.mxu0 0
    %71 = vmatpush1.bf16.msra.mxu0 0
    %72 = vmatprep.subr.bf16.mxu0 0
    %73 = vmatpush1.bf16.msra.mxu0 0
    %74 = vmatprep.mubr.bf16.mxu0 0
    %75 = vmatmul.mubr.bf16.gmra.mrb[0].mxu0 %v40
    %v76 = vpop.f32.mrb[0].mxu0
    %v77 = vadd.f32 %v30, %v76
    %v78 = vpop.f32.mrb[0].mxu0
    %v79 = vpop.f32.mrb[0].mxu0
    %v80 = vpop.f32.mrb[0].mxu0
    %81 = vdwg.mxu0
    %v82 = vmax.f32 %v77, 0.0
    %v83 = vpack.c.bf16 %v82, %v82
    %v84 = vld [vmem:[%s3] sm:$0xf]
    %v85 = vld [vmem:[%s3 + $0x4] sm:$0xf]
    %v86 = vld [vmem:[%s3 + $0x8] sm:$0xf]
    %v87 = vld [vmem:[%s3 + $0xc] sm:$0xf]
    %v88 = vld [vmem:[%s3 + $0x10] sm:$0xf]
    %v89 = vld [vmem:[%s3 + $0x14] sm:$0xf]
    %v90 = vld [vmem:[%s3 + $0x18] sm:$0xf]
    %v91 = vld [vmem:[%s3 + $0x1c] sm:$0xf]
    %v92 = vld [vmem:[%s3 + $0x20] sm:$0xf]
    %v93 = vld [vmem:[%s3 + $0x24] sm:$0xf]
    %v94 = vld [vmem:[%s3 + $0x28] sm:$0xf]
    %v95 = vld [vmem:[%s3 + $0x2c] sm:$0xf]
    %v96 = vld [vmem:[%s3 + $0x30] sm:$0xf]
    %v97 = vld [vmem:[%s3 + $0x34] sm:$0xf]
    %v98 = vld [vmem:[%s3 + $0x38] sm:$0xf]
    %v99 = vld [vmem:[%s3 + $0x3c] sm:$0xf]
    %v100 = vld [vmem:[%s4] sm:$0x1]
    %v102 = vlaneseq
    %v103 = vshrl.u32 %v102, 7
    %v104 = vsub.s32 0, %v103
    %v105 = vrot.slane %v100, %v104
    %v123 = vunpack.c.l.b16 %v84
    %v124 = vunpack.c.l.b16 %v85
    %v125 = vunpack.c.l.b16 %v86
    %v126 = vunpack.c.l.b16 %v87
    %v127 = vunpack.c.l.b16 %v88
    %v128 = vunpack.c.l.b16 %v89
    %v129 = vunpack.c.l.b16 %v90
    %v130 = vunpack.c.l.b16 %v91
    %v131 = vunpack.c.l.b16 %v92
    %v132 = vunpack.c.l.b16 %v93
    %v133 = vunpack.c.l.b16 %v94
    %v134 = vunpack.c.l.b16 %v95
    %v135 = vunpack.c.l.b16 %v96
    %v136 = vunpack.c.l.b16 %v97
    %v137 = vunpack.c.l.b16 %v98
    %v138 = vunpack.c.l.b16 %v99
    %v139 = vpack.c.b16 %v124, %v123
    %v140 = vpack.c.b16 %v126, %v125
    %v141 = vpack.c.b16 %v128, %v127
    %v142 = vpack.c.b16 %v130, %v129
    %v143 = vpack.c.b16 %v132, %v131
    %v144 = vpack.c.b16 %v134, %v133
    %v145 = vpack.c.b16 %v136, %v135
    %v146 = vpack.c.b16 %v138, %v137
    %155 = vmatprep.subr.bf16.mxu0 0
    %156 = vmatpush1.bf16.msra.mxu0 %v139
    %157 = vmatprep.subr.bf16.mxu0 0
    %158 = vmatpush1.bf16.msra.mxu0 %v140
    %159 = vmatprep.subr.bf16.mxu0 0
    %160 = vmatpush1.bf16.msra.mxu0 %v141
    %161 = vmatprep.subr.bf16.mxu0 0
    %162 = vmatpush1.bf16.msra.mxu0 %v142
    %163 = vmatprep.subr.bf16.mxu0 0
    %164 = vmatpush1.bf16.msra.mxu0 %v143
    %165 = vmatprep.subr.bf16.mxu0 0
    %166 = vmatpush1.bf16.msra.mxu0 %v144
    %167 = vmatprep.subr.bf16.mxu0 0
    %168 = vmatpush1.bf16.msra.mxu0 %v145
    %169 = vmatprep.subr.bf16.mxu0 0
    %170 = vmatpush1.bf16.msra.mxu0 %v146
    %171 = vmatprep.subr.bf16.mxu0 0
    %172 = vmatpush1.bf16.msra.mxu0 0
    %173 = vmatprep.subr.bf16.mxu0 0
    %174 = vmatpush1.bf16.msra.mxu0 0
    %175 = vmatprep.subr.bf16.mxu0 0
    %176 = vmatpush1.bf16.msra.mxu0 0
    %177 = vmatprep.subr.bf16.mxu0 0
    %178 = vmatpush1.bf16.msra.mxu0 0
    %179 = vmatprep.subr.bf16.mxu0 0
    %180 = vmatpush1.bf16.msra.mxu0 0
    %181 = vmatprep.subr.bf16.mxu0 0
    %182 = vmatpush1.bf16.msra.mxu0 0
    %183 = vmatprep.subr.bf16.mxu0 0
    %184 = vmatpush1.bf16.msra.mxu0 0
    %185 = vmatprep.subr.bf16.mxu0 0
    %186 = vmatpush1.bf16.msra.mxu0 0
    %187 = vmatprep.mubr.bf16.mxu0 0
    %188 = vmatmul.mubr.bf16.gmra.mrb[0].mxu0 %v83
    %v189 = vpop.f32.mrb[0].mxu0
    %v190 = vadd.f32 %v105, %v189
    %v191 = vpop.f32.mrb[0].mxu0
    %v192 = vpop.f32.mrb[0].mxu0
    %v193 = vpop.f32.mrb[0].mxu0
    %194 = vdwg.mxu0
    %195 = vst [vmem:[#allocation2] sm:$0xff] %v190
    // Predicated region
    $region22: #{decoder_forward.1} parent=1 // pred_check
      _
    $region23: #{decoder_forward.1} parent=1 // pred_check_branch
      %197 = sbr.rel (0) target = $region25
    $region24: #{decoder_forward.1} parent=1 // pred_region
      %s199 = ssub.s32 128, 128
      %200 = vsyncadd [#allocation3], %s199
      %s202 = sshll.u32 [#allocation2], 4
      %s203 = int_to_ptr.vmem [resolvable:$true] %s202
      %205 = dma.vmem_to_hbm [thread:$0]  %s203, 128, %s5, [#allocation3]
    $region25: #{decoder_forward.1} parent=1 // pred_fallthru
      _
    // Predicated region
    $region26: #{decoder_forward.1} parent=1 // pred_check
      _
    $region27: #{decoder_forward.1} parent=1 // pred_check_branch
      %207 = sbr.rel (0) target = $region29
    $region28: #{decoder_forward.1} parent=1 // pred_region
      %208 = dma.done [#allocation3], 128
    $region29: #{decoder_forward.1} parent=1 // pred_fallthru
      _
    %209 = vsyncpa [#allocation3], 1

</llo_original>
